<compile_context>
chip_gen: v7x
topology: tpu7x:2x2x1
jax: 0.10.0
libtpu: 0.0.40
codegen_flags: <defaults>
</compile_context>

<pallas_src>
import math

import jax
import jax.numpy as jnp
from jax.experimental import pallas as pl
from jax.experimental.pallas import tpu as pltpu


# ----------------------------------------------------------------------------
# Pass 1: phase-decomposed transposed conv + fused BN statistics (per image).
# ----------------------------------------------------------------------------
def conv_phase_kernel(s_ref, w_ref, conv_ref, sum_ref, sumsq_ref):
    """Per grid step (one batch element):
       s_ref:     (4*Ci, M)   4 shifted input windows stacked on the K axis.
       w_ref:     (4*Co, 4*Ci) phase-combined ConvTranspose2d weight.
       conv_ref:  (4*Co, M)   conv output as 4 output-parity phase planes.
       sum_ref, sumsq_ref: (4*Co, 1) per-(phase, channel) BN partial stats."""
    # Single MXU matmul; M = H*W sits in the lane dimension (dense).
    # NOTE: HIGHEST precision is kept because the FLOP count here is tiny and
    # it lets the test compare tightly against an f32 reference; for realistic
    # channel widths on v5e drop to DEFAULT / bf16 inputs with f32 accumulate.
    p = jnp.dot(w_ref[...], s_ref[...],
                preferred_element_type=jnp.float32,
                precision=jax.lax.Precision.HIGHEST)          # (4*Co, M)
    conv_ref[...] = p
    # One-pass BN statistics (biased variance assembled in the wrapper).
    sum_ref[...] = jnp.sum(p, axis=1, keepdims=True)          # (4*Co, 1)
    sumsq_ref[...] = jnp.sum(p * p, axis=1, keepdims=True)    # (4*Co, 1)


# ----------------------------------------------------------------------------
# Pass 2: normalize + affine + ReLU (pure elementwise, lane-dense).
# ----------------------------------------------------------------------------
def bn_relu_kernel(p_ref, scale_ref, shift_ref, o_ref):
    """o = relu(conv * scale + shift); scale/shift are per (phase, channel) row."""
    o_ref[...] = jnp.maximum(p_ref[...] * scale_ref[...] + shift_ref[...], 0.0)


def trans_conv_forward(x_nchw, weight, bias, gamma, beta, eps=1e-5):
    """x: (N, Ci, H, W); weight: (Ci, Co, 3, 3) PyTorch ConvTranspose2d layout."""
    # Conv bias is mathematically cancelled by training-mode BN mean subtraction.
    del bias
    N, Ci, H, W = x_nchw.shape
    Co = weight.shape[1]
    Ho, Wo = 2 * H, 2 * W
    M = H * W

    # ---- wrapper glue (plain JAX, small tensors): shifted windows + weight fold
    x = x_nchw.astype(jnp.float32)
    xp = jnp.pad(x, ((0, 0), (0, 0), (0, 1), (0, 1)))   # zero halo row/col
    a = xp[:, :, :H, :W]      # x[r,   c  ]
    b = xp[:, :, :H, 1:]      # x[r,   c+1]
    c = xp[:, :, 1:, :W]      # x[r+1, c  ]
    d = xp[:, :, 1:, 1:]      # x[r+1, c+1]
    s_all = jnp.concatenate([a, b, c, d], axis=1).reshape(N, 4 * Ci, M)

    # Phase-combined weight. T[kh,kw] = weight[:, :, kh, kw].T  (Co, Ci).
    wt = jnp.transpose(weight.astype(jnp.float32), (2, 3, 1, 0))   # (kh, kw, Co, Ci)
    z = jnp.zeros((Co, Ci), jnp.float32)
    w_cat = jnp.concatenate([
        jnp.concatenate([wt[1, 1], z,        z,        z       ], axis=1),  # out(2r,   2c)
        jnp.concatenate([wt[1, 2], wt[1, 0], z,        z       ], axis=1),  # out(2r,   2c+1)
        jnp.concatenate([wt[2, 1], z,        wt[0, 1], z       ], axis=1),  # out(2r+1, 2c)
        jnp.concatenate([wt[2, 2], wt[2, 0], wt[0, 2], wt[0, 0]], axis=1),  # out(2r+1, 2c+1)
    ], axis=0)                                                    # (4*Co, 4*Ci)

    cparams = pltpu.CompilerParams(dimension_semantics=("parallel",),
                                   vmem_limit_bytes=32 * 1024 * 1024)

    conv, s1, s2 = pl.pallas_call(
        conv_phase_kernel,
        grid=(N,),
        in_specs=[pl.BlockSpec((None, 4 * Ci, M), lambda n: (n, 0, 0)),
                  pl.BlockSpec((4 * Co, 4 * Ci), lambda n: (0, 0))],
        out_specs=(pl.BlockSpec((None, 4 * Co, M), lambda n: (n, 0, 0)),
                   pl.BlockSpec((None, 4 * Co, 1), lambda n: (n, 0, 0)),
                   pl.BlockSpec((None, 4 * Co, 1), lambda n: (n, 0, 0))),
        out_shape=(jax.ShapeDtypeStruct((N, 4 * Co, M), jnp.float32),
                   jax.ShapeDtypeStruct((N, 4 * Co, 1), jnp.float32),
                   jax.ShapeDtypeStruct((N, 4 * Co, 1), jnp.float32)),
        compiler_params=cparams,
    )(s_all, w_cat)

    # ---- BatchNorm2d training-mode statistics (biased variance, eps=1e-5).
    cnt = jnp.float32(N * Ho * Wo)
    ch_sum = jnp.sum(s1[:, :, 0], axis=0).reshape(4, Co).sum(axis=0)     # (Co,)
    ch_sumsq = jnp.sum(s2[:, :, 0], axis=0).reshape(4, Co).sum(axis=0)   # (Co,)
    mean = ch_sum / cnt
    var = jnp.maximum(ch_sumsq / cnt - mean * mean, 0.0)
    scale = gamma.astype(jnp.float32) * jax.lax.rsqrt(var + eps)
    shift = beta.astype(jnp.float32) - mean * scale
    scale4 = jnp.tile(scale, 4).reshape(4 * Co, 1)
    shift4 = jnp.tile(shift, 4).reshape(4 * Co, 1)
    # TODO(synk): BatchNorm running_mean/running_var (momentum) buffer updates
    # are training-side state and not modeled; they do not affect this output.

    y_planes = pl.pallas_call(
        bn_relu_kernel,
        grid=(N,),
        in_specs=[pl.BlockSpec((None, 4 * Co, M), lambda n: (n, 0, 0)),
                  pl.BlockSpec((4 * Co, 1), lambda n: (0, 0)),
                  pl.BlockSpec((4 * Co, 1), lambda n: (0, 0))],
        out_specs=pl.BlockSpec((None, 4 * Co, M), lambda n: (n, 0, 0)),
        out_shape=jax.ShapeDtypeStruct((N, 4 * Co, M), jnp.float32),
        compiler_params=cparams,
    )(conv, scale4, shift4)

    # ---- re-interleave the 4 output-parity phase planes into NCHW output.
    y = y_planes.reshape(N, 2, 2, Co, H, W)          # (n, a, b, co, r, c)
    y = jnp.transpose(y, (0, 3, 4, 1, 5, 2))         # (n, co, r, a, c, b)
    return y.reshape(N, Co, Ho, Wo)                  # o[n, co, 2r+a, 2c+b]


def reference_forward(x, weight, bias, gamma, beta, eps=1e-5):
    """Pure-JAX reference (NCHW): ConvTranspose2d + BatchNorm2d(train) + ReLU."""
    w_flip = jnp.transpose(weight[:, :, ::-1, ::-1], (1, 0, 2, 3))  # (Co, Ci, 3, 3)
    y = jax.lax.conv_general_dilated(
        x, w_flip, window_strides=(1, 1), padding=((1, 2), (1, 2)),
        lhs_dilation=(2, 2), dimension_numbers=("NCHW", "OIHW", "NCHW"),
        precision=jax.lax.Precision.HIGHEST)
    y = y + bias.reshape(1, -1, 1, 1)
    mean = y.mean(axis=(0, 2, 3), keepdims=True)
    var = ((y - mean) ** 2).mean(axis=(0, 2, 3), keepdims=True)
    y = (y - mean) * jax.lax.rsqrt(var + eps)
    y = y * gamma.reshape(1, -1, 1, 1) + beta.reshape(1, -1, 1, 1)
    return jnp.maximum(y, 0.0)


if __name__ == "__main__":
    N, Ci, H, W = 2, 4, 16, 16
    Co = 8

    key = jax.random.PRNGKey(0)
    k1, k2, k3, k4, k5 = jax.random.split(key, 5)

    x = jax.random.normal(k1, (N, Ci, H, W), jnp.float32)

    fan_in = Ci * 3 * 3
    bound = 1.0 / math.sqrt(fan_in)
    weight = jax.random.uniform(k2, (Ci, Co, 3, 3), jnp.float32, -bound, bound)
    bias = jax.random.uniform(k3, (Co,), jnp.float32, -bound, bound)
    gamma = 1.0 + 0.1 * jax.random.normal(k4, (Co,), jnp.float32)
    beta = 0.1 * jax.random.normal(k5, (Co,), jnp.float32)

    fwd = jax.jit(trans_conv_forward)
    y = jax.block_until_ready(fwd(x, weight, bias, gamma, beta))

    y_ref = reference_forward(x, weight, bias, gamma, beta)
    assert y.shape == (N, Co, 2 * H, 2 * W), y.shape
    max_err = float(jnp.max(jnp.abs(y - y_ref)))
    assert max_err < 1e-3, max_err

    print("KERNEL_OK")
</pallas_src>

<mosaic_0001>
module attributes {stable_mosaic.version = 11 : i64} {
  func.func @bn_relu_kernel(%arg0: i32, %arg1: memref<1x32x256xf32, #tpu.memory_space<vmem>>, %arg2: memref<32x1xf32, #tpu.memory_space<vmem>>, %arg3: memref<32x1xf32, #tpu.memory_space<vmem>>, %arg4: memref<1x32x256xf32, #tpu.memory_space<vmem>>) attributes {dimension_semantics = [#tpu.dimension_semantics<parallel>], iteration_bounds = array<i64: 2>, scalar_prefetch = 0 : i64, scratch_operands = 0 : i64, tpu.core_type = #tpu.core_type<tc>, window_params = [{transform_indices = @transform_0, window_bounds = array<i64: 1, 32, 256>}, {pipeline_mode = #tpu.pipeline_mode<synchronous>, transform_indices = @transform_1, window_bounds = array<i64: 32, 1>}, {pipeline_mode = #tpu.pipeline_mode<synchronous>, transform_indices = @transform_2, window_bounds = array<i64: 32, 1>}, {transform_indices = @transform_3, window_bounds = array<i64: 1, 32, 256>}]} {
    %c0 = arith.constant 0 : index
    %c0_0 = arith.constant 0 : index
    %c0_1 = arith.constant 0 : index
    %0 = vector.load %arg1[%c0, %c0_0, %c0_1] : memref<1x32x256xf32, #tpu.memory_space<vmem>>, vector<1x32x256xf32>
    %1 = vector.shape_cast %0 : vector<1x32x256xf32> to vector<32x256xf32>
    %c0_2 = arith.constant 0 : index
    %c0_3 = arith.constant 0 : index
    %2 = vector.load %arg2[%c0_2, %c0_3] : memref<32x1xf32, #tpu.memory_space<vmem>>, vector<32x1xf32>
    %3 = vector.broadcast %2 : vector<32x1xf32> to vector<32x256xf32>
    %4 = arith.mulf %1, %3 : vector<32x256xf32>
    %c0_4 = arith.constant 0 : index
    %c0_5 = arith.constant 0 : index
    %5 = vector.load %arg3[%c0_4, %c0_5] : memref<32x1xf32, #tpu.memory_space<vmem>>, vector<32x1xf32>
    %6 = vector.broadcast %5 : vector<32x1xf32> to vector<32x256xf32>
    %7 = arith.addf %4, %6 : vector<32x256xf32>
    %cst = arith.constant 0.000000e+00 : f32
    %8 = vector.broadcast %cst : f32 to vector<32x256xf32>
    %9 = arith.maximumf %7, %8 : vector<32x256xf32>
    %c0_6 = arith.constant 0 : index
    %c0_7 = arith.constant 0 : index
    %c0_8 = arith.constant 0 : index
    %10 = vector.load %arg4[%c0_6, %c0_7, %c0_8] : memref<1x32x256xf32, #tpu.memory_space<vmem>>, vector<1x32x256xf32>
    %11 = vector.shape_cast %10 : vector<1x32x256xf32> to vector<32x256xf32>
    %12 = vector.shape_cast %9 : vector<32x256xf32> to vector<1x32x256xf32>
    tpu.vector_store %arg4[%c0_6, %c0_7, %c0_8], %12 {strides = array<i32>} : memref<1x32x256xf32, #tpu.memory_space<vmem>>, vector<1x32x256xf32>,
    return
  }
  func.func @transform_0(%arg0: i32) -> (i32, i32, i32) {
    %c0_i32 = arith.constant 0 : i32
    %c0_i32_0 = arith.constant 0 : i32
    %c0_i32_1 = arith.constant 0 : i32
    return %arg0, %c0_i32, %c0_i32_0 : i32, i32, i32
  }
  func.func @transform_1(%arg0: i32) -> (i32, i32) {
    %c0_i32 = arith.constant 0 : i32
    %c0_i32_0 = arith.constant 0 : i32
    %c0_i32_1 = arith.constant 0 : i32
    return %c0_i32, %c0_i32_0 : i32, i32
  }
  func.func @transform_2(%arg0: i32) -> (i32, i32) {
    %c0_i32 = arith.constant 0 : i32
    %c0_i32_0 = arith.constant 0 : i32
    %c0_i32_1 = arith.constant 0 : i32
    return %c0_i32, %c0_i32_0 : i32, i32
  }
  func.func @transform_3(%arg0: i32) -> (i32, i32, i32) {
    %c0_i32 = arith.constant 0 : i32
    %c0_i32_0 = arith.constant 0 : i32
    %c0_i32_1 = arith.constant 0 : i32
    return %arg0, %c0_i32, %c0_i32_0 : i32, i32, i32
  }
}

module attributes {stable_mosaic.version = 11 : i64} {
  func.func @conv_phase_kernel(%arg0: i32, %arg1: memref<1x16x256xf32, #tpu.memory_space<vmem>>, %arg2: memref<32x16xf32, #tpu.memory_space<vmem>>, %arg3: memref<1x32x256xf32, #tpu.memory_space<vmem>>, %arg4: memref<1x32x1xf32, #tpu.memory_space<vmem>>, %arg5: memref<1x32x1xf32, #tpu.memory_space<vmem>>) attributes {dimension_semantics = [#tpu.dimension_semantics<parallel>], iteration_bounds = array<i64: 2>, scalar_prefetch = 0 : i64, scratch_operands = 0 : i64, tpu.core_type = #tpu.core_type<tc>, window_params = [{transform_indices = @transform_0, window_bounds = array<i64: 1, 16, 256>}, {pipeline_mode = #tpu.pipeline_mode<synchronous>, transform_indices = @transform_1, window_bounds = array<i64: 32, 16>}, {transform_indices = @transform_2, window_bounds = array<i64: 1, 32, 256>}, {transform_indices = @transform_3, window_bounds = array<i64: 1, 32, 1>}, {transform_indices = @transform_4, window_bounds = array<i64: 1, 32, 1>}]} {
    %c0 = arith.constant 0 : index
    %c0_0 = arith.constant 0 : index
    %0 = vector.load %arg2[%c0, %c0_0] : memref<32x16xf32, #tpu.memory_space<vmem>>, vector<32x16xf32>
    %c0_1 = arith.constant 0 : index
    %c0_2 = arith.constant 0 : index
    %c0_3 = arith.constant 0 : index
    %1 = vector.load %arg1[%c0_1, %c0_2, %c0_3] : memref<1x16x256xf32, #tpu.memory_space<vmem>>, vector<1x16x256xf32>
    %2 = vector.shape_cast %1 : vector<1x16x256xf32> to vector<16x256xf32>
    %cst = arith.constant dense<0.000000e+00> : vector<32x256xf32>
    %3 = tpu.matmul %0, %2, %cst {dimension_numbers = #tpu.dot_dimension_numbers<[1], [0], [0], [1], [0, 0, 1, 1], [], []>, precision = #tpu.contract_precision<fp32>} : vector<32x16xf32>, vector<16x256xf32>, vector<32x256xf32> -> vector<32x256xf32>
    %c0_4 = arith.constant 0 : index
    %c0_5 = arith.constant 0 : index
    %c0_6 = arith.constant 0 : index
    %4 = vector.load %arg3[%c0_4, %c0_5, %c0_6] : memref<1x32x256xf32, #tpu.memory_space<vmem>>, vector<1x32x256xf32>
    %5 = vector.shape_cast %4 : vector<1x32x256xf32> to vector<32x256xf32>
    %6 = vector.shape_cast %3 : vector<32x256xf32> to vector<1x32x256xf32>
    tpu.vector_store %arg3[%c0_4, %c0_5, %c0_6], %6 {strides = array<i32>} : memref<1x32x256xf32, #tpu.memory_space<vmem>>, vector<1x32x256xf32>,
    %cst_7 = arith.constant dense<0.000000e+00> : vector<32xf32>
    %7 = vector.multi_reduction <add>, %3, %cst_7 [1] : vector<32x256xf32> to vector<32xf32>
    %8 = vector.shape_cast %7 : vector<32xf32> to vector<32x1xf32>
    %c0_8 = arith.constant 0 : index
    %c0_9 = arith.constant 0 : index
    %c0_10 = arith.constant 0 : index
    %9 = vector.load %arg4[%c0_8, %c0_9, %c0_10] : memref<1x32x1xf32, #tpu.memory_space<vmem>>, vector<1x32x1xf32>
    %10 = vector.shape_cast %9 : vector<1x32x1xf32> to vector<32x1xf32>
    %11 = vector.shape_cast %8 : vector<32x1xf32> to vector<1x32x1xf32>
    tpu.vector_store %arg4[%c0_8, %c0_9, %c0_10], %11 {strides = array<i32>} : memref<1x32x1xf32, #tpu.memory_space<vmem>>, vector<1x32x1xf32>,
    %12 = arith.mulf %3, %3 : vector<32x256xf32>
    %cst_11 = arith.constant dense<0.000000e+00> : vector<32xf32>
    %13 = vector.multi_reduction <add>, %12, %cst_11 [1] : vector<32x256xf32> to vector<32xf32>
    %14 = vector.shape_cast %13 : vector<32xf32> to vector<32x1xf32>
    %c0_12 = arith.constant 0 : index
    %c0_13 = arith.constant 0 : index
    %c0_14 = arith.constant 0 : index
    %15 = vector.load %arg5[%c0_12, %c0_13, %c0_14] : memref<1x32x1xf32, #tpu.memory_space<vmem>>, vector<1x32x1xf32>
    %16 = vector.shape_cast %15 : vector<1x32x1xf32> to vector<32x1xf32>
    %17 = vector.shape_cast %14 : vector<32x1xf32> to vector<1x32x1xf32>
    tpu.vector_store %arg5[%c0_12, %c0_13, %c0_14], %17 {strides = array<i32>} : memref<1x32x1xf32, #tpu.memory_space<vmem>>, vector<1x32x1xf32>,
    return
  }
  func.func @transform_0(%arg0: i32) -> (i32, i32, i32) {
    %c0_i32 = arith.constant 0 : i32
    %c0_i32_0 = arith.constant 0 : i32
    %c0_i32_1 = arith.constant 0 : i32
    return %arg0, %c0_i32, %c0_i32_0 : i32, i32, i32
  }
  func.func @transform_1(%arg0: i32) -> (i32, i32) {
    %c0_i32 = arith.constant 0 : i32
    %c0_i32_0 = arith.constant 0 : i32
    %c0_i32_1 = arith.constant 0 : i32
    return %c0_i32, %c0_i32_0 : i32, i32
  }
  func.func @transform_2(%arg0: i32) -> (i32, i32, i32) {
    %c0_i32 = arith.constant 0 : i32
    %c0_i32_0 = arith.constant 0 : i32
    %c0_i32_1 = arith.constant 0 : i32
    return %arg0, %c0_i32, %c0_i32_0 : i32, i32, i32
  }
  func.func @transform_3(%arg0: i32) -> (i32, i32, i32) {
    %c0_i32 = arith.constant 0 : i32
    %c0_i32_0 = arith.constant 0 : i32
    %c0_i32_1 = arith.constant 0 : i32
    return %arg0, %c0_i32, %c0_i32_0 : i32, i32, i32
  }
  func.func @transform_4(%arg0: i32) -> (i32, i32, i32) {
    %c0_i32 = arith.constant 0 : i32
    %c0_i32_0 = arith.constant 0 : i32
    %c0_i32_1 = arith.constant 0 : i32
    return %arg0, %c0_i32, %c0_i32_0 : i32, i32, i32
  }
}

</mosaic_0001>

<llo_original>
// kernel: tile.18
$region0: #{tile.18}
  #allocation0 [shape = 's32[1]{0}', space=sflag, size = 0x4, scoped, tag = 'scoped memory for tile.18']
  %s0 = inlined_call_operand.vmem [shape: f32[8], index: 0, kind: input, shape index: {}]
  %s1 = inlined_call_operand.vmem [shape: f32[4,8], index: 1, kind: output, shape index: {}]
  // Predicated region
  $region2: #{tile.18} parent=0 // pred_check
    _
  $region3: #{tile.18} parent=0 // pred_check_branch
    %3 = sbr.rel (0) target = $region5
  $region4: #{tile.18} parent=0 // pred_region
    _
  $region5: #{tile.18} parent=0 // pred_fallthru
    _
  %v4 = vld [vmem:[%s0] ss:$0 sm:$0xff]
  %5 = vst [vmem:[%s1] sm:$0xf] %v4

// kernel: tile.0
$region0: #{tile.0}
  %s0 = inlined_call_operand.vmem [shape: f32[4,8], index: 0, kind: input, shape index: {}]
  %s1 = inlined_call_operand.vmem [shape: f32[32,1], index: 1, kind: output, shape index: {}]
  $region1: #{tile.0} parent=0
    #allocation0 [shape = 'u8[4096]{0}', space=vmem, size = 0x1000, scoped, tag = 'scoped mem for input reshape']
    %s3 = sshllo.u32 0, 4
    %v4 = vld [vmem:[%s0] sm:%s3]
    %5 = vst [vmem:[#allocation0] sm:%s3] %v4
    %v6 = vld [vmem:[#allocation0] sm:$0xf]
    %vm7 = vcmask 7168
    %8 = vst.msk [vmem:[%s1] ss:$8 sm:$0xf] %vm7, %v6
    %v9 = vld [vmem:[#allocation0] sm:$0xf]
    %10 = vrot.lane.b32.xlu0 %v9, 127
    %v11 = vpop.permute.xlu0 %10
    %vm12 = vcmask 7168
    %s13 = scalar_lea.vmem %s1, 1
    %14 = vst.msk [vmem:[%s13] ss:$8 sm:$0xf] %vm12, %v11
    %v15 = vld [vmem:[#allocation0] sm:$0xf]
    %16 = vrot.lane.b32.xlu0 %v15, 126
    %v17 = vpop.permute.xlu0 %16
    %vm18 = vcmask 7168
    %s19 = scalar_lea.vmem %s1, 2
    %20 = vst.msk [vmem:[%s19] ss:$8 sm:$0xf] %vm18, %v17
    %v21 = vld [vmem:[#allocation0] sm:$0xf]
    %22 = vrot.lane.b32.xlu0 %v21, 125
    %v23 = vpop.permute.xlu0 %22
    %vm24 = vcmask 7168
    %s25 = scalar_lea.vmem %s1, 3
    %26 = vst.msk [vmem:[%s25] ss:$8 sm:$0xf] %vm24, %v23
    %v27 = vld [vmem:[#allocation0] sm:$0xf]
    %28 = vrot.lane.b32.xlu0 %v27, 124
    %v29 = vpop.permute.xlu0 %28
    %vm30 = vcmask 7168
    %s31 = scalar_lea.vmem %s1, 4
    %32 = vst.msk [vmem:[%s31] ss:$8 sm:$0xf] %vm30, %v29
    %v33 = vld [vmem:[#allocation0] sm:$0xf]
    %34 = vrot.lane.b32.xlu0 %v33, 123
    %v35 = vpop.permute.xlu0 %34
    %vm36 = vcmask 7168
    %s37 = scalar_lea.vmem %s1, 5
    %38 = vst.msk [vmem:[%s37] ss:$8 sm:$0xf] %vm36, %v35
    %v39 = vld [vmem:[#allocation0] sm:$0xf]
    %40 = vrot.lane.b32.xlu0 %v39, 122
    %v41 = vpop.permute.xlu0 %40
    %vm42 = vcmask 7168
    %s43 = scalar_lea.vmem %s1, 6
    %44 = vst.msk [vmem:[%s43] ss:$8 sm:$0xf] %vm42, %v41
    %v45 = vld [vmem:[#allocation0] sm:$0xf]
    %46 = vrot.lane.b32.xlu0 %v45, 121
    %v47 = vpop.permute.xlu0 %46
    %vm48 = vcmask 7168
    %s49 = scalar_lea.vmem %s1, 7
    %50 = vst.msk [vmem:[%s49] ss:$8 sm:$0xf] %vm48, %v47

// kernel: trans_conv_forward.3
$region0: #{trans_conv_forward.3}
  #allocation0 [shape = 'u32[]', space=smem, size = 0x4, offset = 0x4, fixed_abs, tag = 'smem constant byte address 0x4 - core index']
  #allocation1 [shape = 'u32[144,128]{1,0:T(1,128)}', space=vmem, size = 0x12000, scoped, tag = 'internal scratch']
  %s0 = inlined_call_operand.vmem [shape: f32[2,32,256], index: 0, kind: input, shape index: {}]
  %s1 = inlined_call_operand.vmem [shape: f32[32,1], index: 1, kind: input, shape index: {}]
  %s2 = inlined_call_operand.vmem [shape: f32[32,1], index: 2, kind: input, shape index: {}]
  %s3 = inlined_call_operand.vmem [shape: f32[2,32,256], index: 3, kind: output, shape index: {}]
  %s4 = sld [smem:[#allocation0]]
  $region45: #{trans_conv_forward.3} parent=0
    _
  %s6 = ssub.s32 1, %s4
  %s7 = scalar_select 0, %s6, %s4
  loop: start=0, step=1, limit=4
  $region2: #{trans_conv_forward.3} parent=0 // loop_pre_header
    _
  $region3: #{trans_conv_forward.3} parent=0 // loop_header
    %s9 = sphi 0, %s13
    %p10 = scmp.ge.s32.totalorder %s9, 4
    %s19 = sphi 0, %s21
    %s22 = sphi 0, %s19
    %s23 = sphi 0, %s22
    %s39 = sphi 0, %s23
    %s43 = sphi 0, %s43
    %s45 = sphi 0, %s43
    %s46 = sphi 0, %s45
    %s60 = sphi 0, %s46
    %s64 = sphi 0, %s64
    %s66 = sphi 0, %s64
    %s67 = sphi 0, %s66
    %s81 = sphi 0, %s67
    %s87 = sphi 0, %s89
    %s90 = sphi 0, %s87
    %s91 = sphi 0, %s90
    %s107 = sphi 0, %s91
  $region4: #{trans_conv_forward.3} parent=0 // loop_header_branch
    %12 = sbr.rel (%p10) target = $region8
  $region5: #{trans_conv_forward.3} parent=0 // loop_body
    %s14 = ssub.s32 %s9, 1
    %s15 = ssub.s32 %s9, 2
    %s16 = sadd.s32 %s9, 1
    %s17 = ssub.s32 %s9, %s16
    %p18 = scmp.eq.s32.totalorder %s17, 0
    %s20 = sadd.s32 %s19, 1
    %s21 = scalar_select %p18, %s19, %s20
    %p24 = pneg %p18
    %p25 = scmp.eq.s32.totalorder %s9, 1
    %p26 = por %p24, %p25
    %p27 = scmp.ne.s32.totalorder %s19, %s22
    %p28 = scmp.eq.s32.totalorder %s9, 0
    %p29 = por %p27, %p28
    %p30 = scmp.ne.s32.totalorder %s19, %s22
    %p31 = scmp.eq.s32.totalorder %s14, 1
    %p32 = por %p30, %p31
    %p33 = scmp.ne.s32.totalorder %s22, %s23
    %p34 = scmp.eq.s32.totalorder %s14, 0
    %p35 = por %p33, %p34
    %p36 = scmp.ne.s32.totalorder %s22, %s23
    %p37 = scmp.eq.s32.totalorder %s15, 1
    %p38 = por %p36, %p37
    %p40 = scmp.ne.s32.totalorder %s23, %s39
    %p41 = scmp.eq.s32.totalorder %s15, 0
    %p42 = por %p40, %p41
    %s44 = sadd.s32 %s43, 1
    %p47 = scmp.eq.s32.totalorder %s9, 1
    %p48 = scmp.ne.s32.totalorder %s43, %s45
    %p49 = scmp.eq.s32.totalorder %s9, 0
    %p50 = por %p48, %p49
    %p51 = scmp.ne.s32.totalorder %s43, %s45
    %p52 = scmp.eq.s32.totalorder %s14, 1
    %p53 = por %p51, %p52
    %p54 = scmp.ne.s32.totalorder %s45, %s46
    %p55 = scmp.eq.s32.totalorder %s14, 0
    %p56 = por %p54, %p55
    %p57 = scmp.ne.s32.totalorder %s45, %s46
    %p58 = scmp.eq.s32.totalorder %s15, 1
    %p59 = por %p57, %p58
    %p61 = scmp.ne.s32.totalorder %s46, %s60
    %p62 = scmp.eq.s32.totalorder %s15, 0
    %p63 = por %p61, %p62
    %s65 = sadd.s32 %s64, 1
    %p68 = scmp.eq.s32.totalorder %s9, 1
    %p69 = scmp.ne.s32.totalorder %s64, %s66
    %p70 = scmp.eq.s32.totalorder %s9, 0
    %p71 = por %p69, %p70
    %p72 = scmp.ne.s32.totalorder %s64, %s66
    %p73 = scmp.eq.s32.totalorder %s14, 1
    %p74 = por %p72, %p73
    %p75 = scmp.ne.s32.totalorder %s66, %s67
    %p76 = scmp.eq.s32.totalorder %s14, 0
    %p77 = por %p75, %p76
    %p78 = scmp.ne.s32.totalorder %s66, %s67
    %p79 = scmp.eq.s32.totalorder %s15, 1
    %p80 = por %p78, %p79
    %p82 = scmp.ne.s32.totalorder %s67, %s81
    %p83 = scmp.eq.s32.totalorder %s15, 0
    %p84 = por %p82, %p83
    %s85 = ssub.s32 %s9, %s16
    %p86 = scmp.eq.s32.totalorder %s85, 0
    %s88 = sadd.s32 %s87, 1
    %s89 = scalar_select %p86, %s87, %s88
    %p92 = pneg %p86
    %p93 = scmp.eq.s32.totalorder %s9, 1
    %p94 = por %p92, %p93
    %p95 = scmp.ne.s32.totalorder %s87, %s90
    %p96 = scmp.eq.s32.totalorder %s9, 0
    %p97 = por %p95, %p96
    %p98 = scmp.ne.s32.totalorder %s87, %s90
    %p99 = scmp.eq.s32.totalorder %s14, 1
    %p100 = por %p98, %p99
    %p101 = scmp.ne.s32.totalorder %s90, %s91
    %p102 = scmp.eq.s32.totalorder %s14, 0
    %p103 = por %p101, %p102
    %p104 = scmp.ne.s32.totalorder %s90, %s91
    %p105 = scmp.eq.s32.totalorder %s15, 1
    %p106 = por %p104, %p105
    %p108 = scmp.ne.s32.totalorder %s91, %s107
    %p109 = scmp.eq.s32.totalorder %s15, 0
    %p110 = por %p108, %p109
    %p111 = scmp.le.s32.totalorder 1, %s9
    %p112 = scmp.lt.s32.totalorder %s9, 3
    %p113 = pnand %p111, %p112
    %p114 = pneg %p113
    // Predicated region
    $region9: #{trans_conv_forward.3} parent=5 // pred_check
      _
    $region10: #{trans_conv_forward.3} parent=5 // pred_check_branch
      %116 = sbr.rel (%p113) target = $region12
    $region11: #{trans_conv_forward.3} parent=5 // pred_region
      %s117 = ssub.s32 %s9, 1
      // Predicated region
      $region13: #{trans_conv_forward.3} parent=11 // pred_check
        %p118 = pneg %p56
      $region14: #{trans_conv_forward.3} parent=11 // pred_check_branch
        %120 = sbr.rel (%p118) target = $region16
      $region15: #{trans_conv_forward.3} parent=11 // pred_region
        _
      $region16: #{trans_conv_forward.3} parent=11 // pred_fallthru
        _
      // Predicated region
      $region17: #{trans_conv_forward.3} parent=11 // pred_check
        %p121 = pneg %p77
      $region18: #{trans_conv_forward.3} parent=11 // pred_check_branch
        %123 = sbr.rel (%p121) target = $region20
      $region19: #{trans_conv_forward.3} parent=11 // pred_region
        _
      $region20: #{trans_conv_forward.3} parent=11 // pred_fallthru
        _
    $region12: #{trans_conv_forward.3} parent=5 // pred_fallthru
      _
    %p124 = scmp.lt.s32.totalorder %s9, 2
    // Predicated region
    $region21: #{trans_conv_forward.3} parent=5 // pred_check
      %p125 = pneg %p124
    $region22: #{trans_conv_forward.3} parent=5 // pred_check_branch
      %127 = sbr.rel (%p125) target = $region24
    $region23: #{trans_conv_forward.3} parent=5 // pred_region
      // Predicated region
      $region25: #{trans_conv_forward.3} parent=23 // pred_check
        %p128 = pneg %p29
      $region26: #{trans_conv_forward.3} parent=23 // pred_check_branch
        %130 = sbr.rel (%p128) target = $region28
      $region27: #{trans_conv_forward.3} parent=23 // pred_region
        %p131 = scmp.lt.s32.totalorder %s9, 1
        %s132 = scalar_select %p131, %s9, 1
        %s133 = smul.addr %s132, 8
        %s134 = smul.addr %s133, 8
        %s135 = scalar_lea.vmem %s0, %s134
      $region28: #{trans_conv_forward.3} parent=23 // pred_fallthru
        _
    $region24: #{trans_conv_forward.3} parent=5 // pred_fallthru
      _
    %p136 = scmp.le.s32.totalorder 1, %s9
    %p137 = scmp.lt.s32.totalorder %s9, 3
    %p138 = pnand %p136, %p137
    %p139 = pneg %p138
    // Predicated region
    $region29: #{trans_conv_forward.3} parent=5 // pred_check
      _
    $region30: #{trans_conv_forward.3} parent=5 // pred_check_branch
      %141 = sbr.rel (%p138) target = $region32
    $region31: #{trans_conv_forward.3} parent=5 // pred_region
      %s142 = ssub.s32 %s9, 1
      %p143 = scmp.lt.s32.totalorder %s14, 1
      %s144 = scalar_select %p143, %s14, 1
      %s145 = smul.addr %s144, 8
      %s146 = smul.addr %s145, 8
      %s147 = scalar_lea.vmem %s0, %s146
      %p148 = pneg %p35
      %p149 = pneg %p32
      %p150 = pneg %p56
      %p151 = pneg %p53
      %p152 = pneg %p77
      %p153 = pneg %p74
      %p154 = pneg %p103
      %p155 = pneg %p100
      %p156 = scmp.lt.s32.totalorder %s14, 1
      %s157 = scalar_select %p156, %s14, 1
      %s158 = smul.addr %s157, 8
      %s159 = smul.addr %s158, 8
      %s160 = scalar_lea.vmem %s3, %s159
      %p161 = scmp.lt.s32.totalorder %s14, 1
      %s162 = scalar_select %p161, %s14, 1
      %s163 = smul.addr %s162, 8
      %s164 = smul.addr %s163, 8
      %s165 = scalar_lea.vmem %s0, %s164
      %p166 = scmp.lt.s32.totalorder %s14, 1
      %s167 = scalar_select %p166, %s14, 1
      %s168 = smul.addr %s167, 8
      %s169 = smul.addr %s168, 8
      %s170 = scalar_lea.vmem %s3, %s169
      %v171 = vld [vmem:[%s165] sm:$0xff]
      %v172 = vld [vmem:[%s165 + $0x8] sm:$0xff]
      %v173 = vld [vmem:[%s165 + $0x10] sm:$0xff]
      %v174 = vld [vmem:[%s165 + $0x18] sm:$0xff]
      %v175 = vld [vmem:[%s165 + $0x20] sm:$0xff]
      %v176 = vld [vmem:[%s165 + $0x28] sm:$0xff]
      %v177 = vld [vmem:[%s165 + $0x30] sm:$0xff]
      %v178 = vld [vmem:[%s165 + $0x38] sm:$0xff]
      %v179 = vld [vmem:[%s1] sm:$0xff]
      %v180 = vld [vmem:[%s1 + $0x8] sm:$0xff]
      %v181 = vld [vmem:[%s1 + $0x10] sm:$0xff]
      %v182 = vld [vmem:[%s1 + $0x18] sm:$0xff]
      %184 = vset.pattern.permute.xlu0 0
      %185 = vperm.xlu0 %184, %v179
      %v186 = vpop.permute.xlu0 %185
      %189 = vset.pattern.permute.xlu0 0
      %190 = vperm.xlu0 %189, %v180
      %v191 = vpop.permute.xlu0 %190
      %194 = vset.pattern.permute.xlu0 0
      %195 = vperm.xlu0 %194, %v181
      %v196 = vpop.permute.xlu0 %195
      %199 = vset.pattern.permute.xlu0 0
      %200 = vperm.xlu0 %199, %v182
      %v201 = vpop.permute.xlu0 %200
      %v203 = vmul.f32 %v171, %v186
      %v204 = vmul.f32 %v172, %v186
      %v205 = vmul.f32 %v173, %v191
      %v206 = vmul.f32 %v174, %v191
      %v207 = vmul.f32 %v175, %v196
      %v208 = vmul.f32 %v176, %v196
      %v209 = vmul.f32 %v177, %v201
      %v210 = vmul.f32 %v178, %v201
      %v211 = vld [vmem:[%s2] sm:$0xff]
      %v212 = vld [vmem:[%s2 + $0x8] sm:$0xff]
      %v213 = vld [vmem:[%s2 + $0x10] sm:$0xff]
      %v214 = vld [vmem:[%s2 + $0x18] sm:$0xff]
      %216 = vset.pattern.permute.xlu0 0
      %217 = vperm.xlu0 %216, %v211
      %v218 = vpop.permute.xlu0 %217
      %221 = vset.pattern.permute.xlu0 0
      %222 = vperm.xlu0 %221, %v212
      %v223 = vpop.permute.xlu0 %222
      %226 = vset.pattern.permute.xlu0 0
      %227 = vperm.xlu0 %226, %v213
      %v228 = vpop.permute.xlu0 %227
      %231 = vset.pattern.permute.xlu0 0
      %232 = vperm.xlu0 %231, %v214
      %v233 = vpop.permute.xlu0 %232
      %v235 = vadd.f32 %v203, %v218
      %v236 = vadd.f32 %v204, %v218
      %v237 = vadd.f32 %v205, %v223
      %v238 = vadd.f32 %v206, %v223
      %v239 = vadd.f32 %v207, %v228
      %v240 = vadd.f32 %v208, %v228
      %v241 = vadd.f32 %v209, %v233
      %v242 = vadd.f32 %v210, %v233
      %v243 = vmax.f32 %v235, 0.0
      %v244 = vmax.f32 %v236, 0.0
      %v245 = vmax.f32 %v237, 0.0
      %v246 = vmax.f32 %v238, 0.0
      %v247 = vmax.f32 %v239, 0.0
      %v248 = vmax.f32 %v240, 0.0
      %v249 = vmax.f32 %v241, 0.0
      %v250 = vmax.f32 %v242, 0.0
      %251 = vst [vmem:[%s170] sm:$0xff] %v243
      %252 = vst [vmem:[%s170 + $0x8] sm:$0xff] %v244
      %253 = vst [vmem:[%s170 + $0x10] sm:$0xff] %v245
      %254 = vst [vmem:[%s170 + $0x18] sm:$0xff] %v246
      %255 = vst [vmem:[%s170 + $0x20] sm:$0xff] %v247
      %256 = vst [vmem:[%s170 + $0x28] sm:$0xff] %v248
      %257 = vst [vmem:[%s170 + $0x30] sm:$0xff] %v249
      %258 = vst [vmem:[%s170 + $0x38] sm:$0xff] %v250
      %p259 = scmp.lt.s32.totalorder %s14, 1
      %s260 = scalar_select %p259, %s14, 1
      %s261 = smul.addr %s260, 8
      %s262 = smul.addr %s261, 8
      %s263 = scalar_lea.vmem %s3, %s262
      // Predicated region
      $region33: #{trans_conv_forward.3} parent=31 // pred_check
        %p264 = pneg %p100
      $region34: #{trans_conv_forward.3} parent=31 // pred_check_branch
        %266 = sbr.rel (%p264) target = $region36
      $region35: #{trans_conv_forward.3} parent=31 // pred_region
        _
      $region36: #{trans_conv_forward.3} parent=31 // pred_fallthru
        _
    $region32: #{trans_conv_forward.3} parent=5 // pred_fallthru
      _
    %p267 = scmp.le.s32.totalorder 2, %s9
    // Predicated region
    $region37: #{trans_conv_forward.3} parent=5 // pred_check
      %p268 = pneg %p267
    $region38: #{trans_conv_forward.3} parent=5 // pred_check_branch
      %270 = sbr.rel (%p268) target = $region40
    $region39: #{trans_conv_forward.3} parent=5 // pred_region
      %s271 = ssub.s32 %s9, 2
      // Predicated region
      $region41: #{trans_conv_forward.3} parent=39 // pred_check
        %p272 = pneg %p106
      $region42: #{trans_conv_forward.3} parent=39 // pred_check_branch
        %274 = sbr.rel (%p272) target = $region44
      $region43: #{trans_conv_forward.3} parent=39 // pred_region
        %p275 = scmp.lt.s32.totalorder %s15, 1
        %s276 = scalar_select %p275, %s15, 1
        %s277 = smul.addr %s276, 8
        %s278 = smul.addr %s277, 8
        %s279 = scalar_lea.vmem %s3, %s278
      $region44: #{trans_conv_forward.3} parent=39 // pred_fallthru
        _
    $region40: #{trans_conv_forward.3} parent=5 // pred_fallthru
      _
  $region6: #{trans_conv_forward.3} parent=0 // loop_footer
    %s13 = sadd.s32 1, %s9
  $region7: #{trans_conv_forward.3} parent=0 // loop_footer_branch
    %8 = sbr.rel target = $region3
  $region8: #{trans_conv_forward.3} parent=0 // loop_exit
    _

// kernel: trans_conv_forward.2
$region0: #{trans_conv_forward.2}
  #allocation0 [shape = 'u32[]', space=smem, size = 0x4, offset = 0x4, fixed_abs, tag = 'smem constant byte address 0x4 - core index']
  #allocation1 [shape = 'u32[144,128]{1,0:T(1,128)}', space=vmem, size = 0x12000, scoped, tag = 'internal scratch']
  %s0 = inlined_call_operand.vmem [shape: f32[2,16,256], index: 0, kind: input, shape index: {}]
  %s1 = inlined_call_operand.vmem [shape: f32[32,16], index: 1, kind: input, shape index: {}]
  %s2 = inlined_call_operand.vmem [shape: f32[2,32,256], index: 2, kind: output, shape index: {0}]
  %s3 = inlined_call_operand.vmem [shape: f32[2,32,1], index: 3, kind: output, shape index: {1}]
  %s4 = inlined_call_operand.vmem [shape: f32[2,32,1], index: 4, kind: output, shape index: {2}]
  %5 = xla_tuple %s2, %s3, %s4
  %s6 = sld [smem:[#allocation0]]
  $region57: #{trans_conv_forward.2} parent=0
    _
  %s8 = ssub.s32 1, %s6
  %s9 = scalar_select 0, %s8, %s6
  loop: start=0, step=1, limit=4
  $region2: #{trans_conv_forward.2} parent=0 // loop_pre_header
    _
  $region3: #{trans_conv_forward.2} parent=0 // loop_header
    %s11 = sphi 0, %s15
    %p12 = scmp.ge.s32.totalorder %s11, 4
    %s21 = sphi 0, %s23
    %s24 = sphi 0, %s21
    %s25 = sphi 0, %s24
    %s41 = sphi 0, %s25
    %s45 = sphi 0, %s45
    %s47 = sphi 0, %s45
    %s48 = sphi 0, %s47
    %s62 = sphi 0, %s48
    %s68 = sphi 0, %s70
    %s71 = sphi 0, %s68
    %s72 = sphi 0, %s71
    %s88 = sphi 0, %s72
    %s94 = sphi 0, %s96
    %s97 = sphi 0, %s94
    %s98 = sphi 0, %s97
    %s114 = sphi 0, %s98
    %s120 = sphi 0, %s122
    %s123 = sphi 0, %s120
    %s124 = sphi 0, %s123
    %s140 = sphi 0, %s124
  $region4: #{trans_conv_forward.2} parent=0 // loop_header_branch
    %14 = sbr.rel (%p12) target = $region8
  $region5: #{trans_conv_forward.2} parent=0 // loop_body
    %s16 = ssub.s32 %s11, 1
    %s17 = ssub.s32 %s11, 2
    %s18 = sadd.s32 %s11, 1
    %s19 = ssub.s32 %s11, %s18
    %p20 = scmp.eq.s32.totalorder %s19, 0
    %s22 = sadd.s32 %s21, 1
    %s23 = scalar_select %p20, %s21, %s22
    %p26 = pneg %p20
    %p27 = scmp.eq.s32.totalorder %s11, 1
    %p28 = por %p26, %p27
    %p29 = scmp.ne.s32.totalorder %s21, %s24
    %p30 = scmp.eq.s32.totalorder %s11, 0
    %p31 = por %p29, %p30
    %p32 = scmp.ne.s32.totalorder %s21, %s24
    %p33 = scmp.eq.s32.totalorder %s16, 1
    %p34 = por %p32, %p33
    %p35 = scmp.ne.s32.totalorder %s24, %s25
    %p36 = scmp.eq.s32.totalorder %s16, 0
    %p37 = por %p35, %p36
    %p38 = scmp.ne.s32.totalorder %s24, %s25
    %p39 = scmp.eq.s32.totalorder %s17, 1
    %p40 = por %p38, %p39
    %p42 = scmp.ne.s32.totalorder %s25, %s41
    %p43 = scmp.eq.s32.totalorder %s17, 0
    %p44 = por %p42, %p43
    %s46 = sadd.s32 %s45, 1
    %p49 = scmp.eq.s32.totalorder %s11, 1
    %p50 = scmp.ne.s32.totalorder %s45, %s47
    %p51 = scmp.eq.s32.totalorder %s11, 0
    %p52 = por %p50, %p51
    %p53 = scmp.ne.s32.totalorder %s45, %s47
    %p54 = scmp.eq.s32.totalorder %s16, 1
    %p55 = por %p53, %p54
    %p56 = scmp.ne.s32.totalorder %s47, %s48
    %p57 = scmp.eq.s32.totalorder %s16, 0
    %p58 = por %p56, %p57
    %p59 = scmp.ne.s32.totalorder %s47, %s48
    %p60 = scmp.eq.s32.totalorder %s17, 1
    %p61 = por %p59, %p60
    %p63 = scmp.ne.s32.totalorder %s48, %s62
    %p64 = scmp.eq.s32.totalorder %s17, 0
    %p65 = por %p63, %p64
    %s66 = ssub.s32 %s11, %s18
    %p67 = scmp.eq.s32.totalorder %s66, 0
    %s69 = sadd.s32 %s68, 1
    %s70 = scalar_select %p67, %s68, %s69
    %p73 = pneg %p67
    %p74 = scmp.eq.s32.totalorder %s11, 1
    %p75 = por %p73, %p74
    %p76 = scmp.ne.s32.totalorder %s68, %s71
    %p77 = scmp.eq.s32.totalorder %s11, 0
    %p78 = por %p76, %p77
    %p79 = scmp.ne.s32.totalorder %s68, %s71
    %p80 = scmp.eq.s32.totalorder %s16, 1
    %p81 = por %p79, %p80
    %p82 = scmp.ne.s32.totalorder %s71, %s72
    %p83 = scmp.eq.s32.totalorder %s16, 0
    %p84 = por %p82, %p83
    %p85 = scmp.ne.s32.totalorder %s71, %s72
    %p86 = scmp.eq.s32.totalorder %s17, 1
    %p87 = por %p85, %p86
    %p89 = scmp.ne.s32.totalorder %s72, %s88
    %p90 = scmp.eq.s32.totalorder %s17, 0
    %p91 = por %p89, %p90
    %s92 = ssub.s32 %s11, %s18
    %p93 = scmp.eq.s32.totalorder %s92, 0
    %s95 = sadd.s32 %s94, 1
    %s96 = scalar_select %p93, %s94, %s95
    %p99 = pneg %p93
    %p100 = scmp.eq.s32.totalorder %s11, 1
    %p101 = por %p99, %p100
    %p102 = scmp.ne.s32.totalorder %s94, %s97
    %p103 = scmp.eq.s32.totalorder %s11, 0
    %p104 = por %p102, %p103
    %p105 = scmp.ne.s32.totalorder %s94, %s97
    %p106 = scmp.eq.s32.totalorder %s16, 1
    %p107 = por %p105, %p106
    %p108 = scmp.ne.s32.totalorder %s97, %s98
    %p109 = scmp.eq.s32.totalorder %s16, 0
    %p110 = por %p108, %p109
    %p111 = scmp.ne.s32.totalorder %s97, %s98
    %p112 = scmp.eq.s32.totalorder %s17, 1
    %p113 = por %p111, %p112
    %p115 = scmp.ne.s32.totalorder %s98, %s114
    %p116 = scmp.eq.s32.totalorder %s17, 0
    %p117 = por %p115, %p116
    %s118 = ssub.s32 %s11, %s18
    %p119 = scmp.eq.s32.totalorder %s118, 0
    %s121 = sadd.s32 %s120, 1
    %s122 = scalar_select %p119, %s120, %s121
    %p125 = pneg %p119
    %p126 = scmp.eq.s32.totalorder %s11, 1
    %p127 = por %p125, %p126
    %p128 = scmp.ne.s32.totalorder %s120, %s123
    %p129 = scmp.eq.s32.totalorder %s11, 0
    %p130 = por %p128, %p129
    %p131 = scmp.ne.s32.totalorder %s120, %s123
    %p132 = scmp.eq.s32.totalorder %s16, 1
    %p133 = por %p131, %p132
    %p134 = scmp.ne.s32.totalorder %s123, %s124
    %p135 = scmp.eq.s32.totalorder %s16, 0
    %p136 = por %p134, %p135
    %p137 = scmp.ne.s32.totalorder %s123, %s124
    %p138 = scmp.eq.s32.totalorder %s17, 1
    %p139 = por %p137, %p138
    %p141 = scmp.ne.s32.totalorder %s124, %s140
    %p142 = scmp.eq.s32.totalorder %s17, 0
    %p143 = por %p141, %p142
    %p144 = scmp.le.s32.totalorder 1, %s11
    %p145 = scmp.lt.s32.totalorder %s11, 3
    %p146 = pnand %p144, %p145
    %p147 = pneg %p146
    // Predicated region
    $region9: #{trans_conv_forward.2} parent=5 // pred_check
      _
    $region10: #{trans_conv_forward.2} parent=5 // pred_check_branch
      %149 = sbr.rel (%p146) target = $region12
    $region11: #{trans_conv_forward.2} parent=5 // pred_region
      %s150 = ssub.s32 %s11, 1
      // Predicated region
      $region13: #{trans_conv_forward.2} parent=11 // pred_check
        %p151 = pneg %p58
      $region14: #{trans_conv_forward.2} parent=11 // pred_check_branch
        %153 = sbr.rel (%p151) target = $region16
      $region15: #{trans_conv_forward.2} parent=11 // pred_region
        _
      $region16: #{trans_conv_forward.2} parent=11 // pred_fallthru
        _
    $region12: #{trans_conv_forward.2} parent=5 // pred_fallthru
      _
    %p154 = scmp.lt.s32.totalorder %s11, 2
    // Predicated region
    $region17: #{trans_conv_forward.2} parent=5 // pred_check
      %p155 = pneg %p154
    $region18: #{trans_conv_forward.2} parent=5 // pred_check_branch
      %157 = sbr.rel (%p155) target = $region20
    $region19: #{trans_conv_forward.2} parent=5 // pred_region
      // Predicated region
      $region21: #{trans_conv_forward.2} parent=19 // pred_check
        %p158 = pneg %p31
      $region22: #{trans_conv_forward.2} parent=19 // pred_check_branch
        %160 = sbr.rel (%p158) target = $region24
      $region23: #{trans_conv_forward.2} parent=19 // pred_region
        %p161 = scmp.lt.s32.totalorder %s11, 1
        %s162 = scalar_select %p161, %s11, 1
        %s163 = smul.addr %s162, 4
        %s164 = smul.addr %s163, 8
        %s165 = scalar_lea.vmem %s0, %s164
      $region24: #{trans_conv_forward.2} parent=19 // pred_fallthru
        _
    $region20: #{trans_conv_forward.2} parent=5 // pred_fallthru
      _
    %p166 = scmp.le.s32.totalorder 1, %s11
    %p167 = scmp.lt.s32.totalorder %s11, 3
    %p168 = pnand %p166, %p167
    %p169 = pneg %p168
    // Predicated region
    $region25: #{trans_conv_forward.2} parent=5 // pred_check
      _
    $region26: #{trans_conv_forward.2} parent=5 // pred_check_branch
      %171 = sbr.rel (%p168) target = $region28
    $region27: #{trans_conv_forward.2} parent=5 // pred_region
      %s172 = ssub.s32 %s11, 1
      %p173 = scmp.lt.s32.totalorder %s16, 1
      %s174 = scalar_select %p173, %s16, 1
      %s175 = smul.addr %s174, 4
      %s176 = smul.addr %s175, 8
      %s177 = scalar_lea.vmem %s0, %s176
      %p178 = pneg %p37
      %p179 = pneg %p34
      %p180 = pneg %p58
      %p181 = pneg %p55
      %p182 = pneg %p84
      %p183 = pneg %p81
      %p184 = scmp.lt.s32.totalorder %s16, 1
      %s185 = scalar_select %p184, %s16, 1
      %s186 = smul.addr %s185, 8
      %s187 = smul.addr %s186, 8
      %s188 = scalar_lea.vmem %s2, %s187
      %p189 = pneg %p110
      %p190 = pneg %p107
      %p191 = scmp.lt.s32.totalorder %s16, 1
      %s192 = scalar_select %p191, %s16, 1
      %s193 = smul.addr %s192, 4
      %s194 = smul.addr %s193, 8
      %s195 = scalar_lea.vmem %s3, %s194
      %p196 = pneg %p136
      %p197 = pneg %p133
      %p198 = scmp.lt.s32.totalorder %s16, 1
      %s199 = scalar_select %p198, %s16, 1
      %s200 = smul.addr %s199, 4
      %s201 = smul.addr %s200, 8
      %s202 = scalar_lea.vmem %s4, %s201
      %p203 = scmp.lt.s32.totalorder %s16, 1
      %s204 = scalar_select %p203, %s16, 1
      %s205 = smul.addr %s204, 4
      %s206 = smul.addr %s205, 8
      %s207 = scalar_lea.vmem %s0, %s206
      %p208 = scmp.lt.s32.totalorder %s16, 1
      %s209 = scalar_select %p208, %s16, 1
      %s210 = smul.addr %s209, 8
      %s211 = smul.addr %s210, 8
      %s212 = scalar_lea.vmem %s2, %s211
      %p213 = scmp.lt.s32.totalorder %s16, 1
      %s214 = scalar_select %p213, %s16, 1
      %s215 = smul.addr %s214, 4
      %s216 = smul.addr %s215, 8
      %s217 = scalar_lea.vmem %s3, %s216
      %p218 = scmp.lt.s32.totalorder %s16, 1
      %s219 = scalar_select %p218, %s16, 1
      %s220 = smul.addr %s219, 4
      %s221 = smul.addr %s220, 8
      %s222 = scalar_lea.vmem %s4, %s221
      %v223 = vld [vmem:[%s1] sm:$0xff]
      %v224 = vld [vmem:[%s1 + $0x8] sm:$0xff]
      %v225 = vld [vmem:[%s1 + $0x10] sm:$0xff]
      %v226 = vld [vmem:[%s1 + $0x18] sm:$0xff]
      %v227 = vld [vmem:[%s207] sm:$0xff]
      %v228 = vld [vmem:[%s207 + $0x8] sm:$0xff]
      %v229 = vld [vmem:[%s207 + $0x10] sm:$0xff]
      %v230 = vld [vmem:[%s207 + $0x18] sm:$0xff]
      %vm231 = vcmask 130048
      %v233 = vsel %vm231, %v223, 0
      %v236 = vsel %vm231, %v224, 0
      %v239 = vsel %vm231, %v225, 0
      %v242 = vsel %vm231, %v226, 0
      %v244 = vand.u32 %v228, 4294901760
      %245 = vmatprep.subr.mxu0 %v244
      %v246 = vand.u32 %v227, 4294901760
      %247 = vmatpush1.msra.mxu0 %v246
      %v248 = vand.u32 %v230, 4294901760
      %249 = vmatprep.subr.mxu0 %v248
      %v250 = vand.u32 %v229, 4294901760
      %251 = vmatpush1.msra.mxu0 %v250
      %252 = vmatprep.subr.mxu0 0.0
      %253 = vmatpush1.msra.mxu0 0.0
      %254 = vmatprep.subr.mxu0 0.0
      %255 = vmatpush1.msra.mxu0 0.0
      %256 = vmatprep.subr.mxu0 0.0
      %257 = vmatpush1.msra.mxu0 0.0
      %258 = vmatprep.subr.mxu0 0.0
      %259 = vmatpush1.msra.mxu0 0.0
      %260 = vmatprep.subr.mxu0 0.0
      %261 = vmatpush1.msra.mxu0 0.0
      %262 = vmatprep.subr.mxu0 0.0
      %263 = vmatpush1.msra.mxu0 0.0
      %264 = vmatprep.subr.mxu0 0.0
      %265 = vmatpush1.msra.mxu0 0.0
      %266 = vmatprep.subr.mxu0 0.0
      %267 = vmatpush1.msra.mxu0 0.0
      %268 = vmatprep.subr.mxu0 0.0
      %269 = vmatpush1.msra.mxu0 0.0
      %270 = vmatprep.subr.mxu0 0.0
      %271 = vmatpush1.msra.mxu0 0.0
      %272 = vmatprep.subr.mxu0 0.0
      %273 = vmatpush1.msra.mxu0 0.0
      %274 = vmatprep.subr.mxu0 0.0
      %275 = vmatpush1.msra.mxu0 0.0
      %276 = vmatprep.subr.mxu0 0.0
      %277 = vmatpush1.msra.mxu0 0.0
      %278 = vmatprep.subr.mxu0 0.0
      %279 = vmatpush1.msra.mxu0 0.0
      %280 = vmatprep.subr.mxu0 0.0
      %281 = vmatpush1.msra.mxu0 0.0
      %282 = vmatprep.subr.mxu0 0.0
      %283 = vmatpush1.msra.mxu0 0.0
      %284 = vmatprep.subr.mxu0 0.0
      %285 = vmatpush1.msra.mxu0 0.0
      %286 = vmatprep.subr.mxu0 0.0
      %287 = vmatpush1.msra.mxu0 0.0
      %288 = vmatprep.subr.mxu0 0.0
      %289 = vmatpush1.msra.mxu0 0.0
      %290 = vmatprep.subr.mxu0 0.0
      %291 = vmatpush1.msra.mxu0 0.0
      %292 = vmatprep.subr.mxu0 0.0
      %293 = vmatpush1.msra.mxu0 0.0
      %294 = vmatprep.subr.mxu0 0.0
      %295 = vmatpush1.msra.mxu0 0.0
      %296 = vmatprep.subr.mxu0 0.0
      %297 = vmatpush1.msra.mxu0 0.0
      %298 = vmatprep.subr.mxu0 0.0
      %299 = vmatpush1.msra.mxu0 0.0
      %300 = vmatprep.subr.mxu0 0.0
      %301 = vmatpush1.msra.mxu0 0.0
      %302 = vmatprep.subr.mxu0 0.0
      %303 = vmatpush1.msra.mxu0 0.0
      %304 = vmatprep.subr.mxu0 0.0
      %305 = vmatpush1.msra.mxu0 0.0
      %306 = vmatprep.subr.mxu0 0.0
      %307 = vmatpush1.msra.mxu0 0.0
      %308 = vmatprep.subr.mxu0 0.0
      %309 = vmatpush1.msra.mxu0 0.0
      %310 = vmatprep.subr.mxu0 0.0
      %311 = vmatpush1.msra.mxu0 0.0
      %312 = vmatprep.mubr.f32.mxu0 0.0
      %v313 = vand.u32 %v233, 4294901760
      %v314 = vsub.f32 %v233, %v313
      %v315 = vand.u32 %v314, 4294901760
      %v316 = vsub.f32 %v314, %v315
      %v317 = vand.u32 %v316, 4294901760
      %318 = vmatmul.mubr.f32.gmra.mrb[0].mxu0 %v317
      %v319 = vpop.f32.mrb[0].mxu0
      %v320 = vadd.f32 0.0, %v319
      %v321 = vpop.f32.mrb[0].mxu0
      %v322 = vadd.f32 0.0, %v321
      %323 = vmatprep.mubr.f32.mxu0 0.0
      %v324 = vand.u32 %v236, 4294901760
      %v325 = vsub.f32 %v236, %v324
      %v326 = vand.u32 %v325, 4294901760
      %v327 = vsub.f32 %v325, %v326
      %v328 = vand.u32 %v327, 4294901760
      %329 = vmatmul.mubr.f32.gmra.mrb[0].mxu0 %v328
      %v330 = vpop.f32.mrb[0].mxu0
      %v331 = vadd.f32 0.0, %v330
      %v332 = vpop.f32.mrb[0].mxu0
      %v333 = vadd.f32 0.0, %v332
      %334 = vmatprep.mubr.f32.mxu0 0.0
      %v335 = vand.u32 %v239, 4294901760
      %v336 = vsub.f32 %v239, %v335
      %v337 = vand.u32 %v336, 4294901760
      %v338 = vsub.f32 %v336, %v337
      %v339 = vand.u32 %v338, 4294901760
      %340 = vmatmul.mubr.f32.gmra.mrb[0].mxu0 %v339
      %v341 = vpop.f32.mrb[0].mxu0
      %v342 = vadd.f32 0.0, %v341
      %v343 = vpop.f32.mrb[0].mxu0
      %v344 = vadd.f32 0.0, %v343
      %345 = vmatprep.mubr.f32.mxu0 0.0
      %v346 = vand.u32 %v242, 4294901760
      %v347 = vsub.f32 %v242, %v346
      %v348 = vand.u32 %v347, 4294901760
      %v349 = vsub.f32 %v347, %v348
      %v350 = vand.u32 %v349, 4294901760
      %351 = vmatmul.mubr.f32.gmra.mrb[0].mxu0 %v350
      %v352 = vpop.f32.mrb[0].mxu0
      %v353 = vadd.f32 0.0, %v352
      %v354 = vpop.f32.mrb[0].mxu0
      %v355 = vadd.f32 0.0, %v354
      %356 = vdwg.mxu0
      %v357 = vand.u32 %v228, 4294901760
      %v358 = vsub.f32 %v228, %v357
      %v359 = vand.u32 %v358, 4294901760
      %v360 = vsub.f32 %v358, %v359
      %v361 = vand.u32 %v360, 4294901760
      %362 = vmatprep.subr.mxu0 %v361
      %v363 = vand.u32 %v227, 4294901760
      %v364 = vsub.f32 %v227, %v363
      %v365 = vand.u32 %v364, 4294901760
      %v366 = vsub.f32 %v364, %v365
      %v367 = vand.u32 %v366, 4294901760
      %368 = vmatpush1.msra.mxu0 %v367
      %v369 = vand.u32 %v230, 4294901760
      %v370 = vsub.f32 %v230, %v369
      %v371 = vand.u32 %v370, 4294901760
      %v372 = vsub.f32 %v370, %v371
      %v373 = vand.u32 %v372, 4294901760
      %374 = vmatprep.subr.mxu0 %v373
      %v375 = vand.u32 %v229, 4294901760
      %v376 = vsub.f32 %v229, %v375
      %v377 = vand.u32 %v376, 4294901760
      %v378 = vsub.f32 %v376, %v377
      %v379 = vand.u32 %v378, 4294901760
      %380 = vmatpush1.msra.mxu0 %v379
      %381 = vmatprep.subr.mxu0 0.0
      %382 = vmatpush1.msra.mxu0 0.0
      %383 = vmatprep.subr.mxu0 0.0
      %384 = vmatpush1.msra.mxu0 0.0
      %385 = vmatprep.subr.mxu0 0.0
      %386 = vmatpush1.msra.mxu0 0.0
      %387 = vmatprep.subr.mxu0 0.0
      %388 = vmatpush1.msra.mxu0 0.0
      %389 = vmatprep.subr.mxu0 0.0
      %390 = vmatpush1.msra.mxu0 0.0
      %391 = vmatprep.subr.mxu0 0.0
      %392 = vmatpush1.msra.mxu0 0.0
      %393 = vmatprep.subr.mxu0 0.0
      %394 = vmatpush1.msra.mxu0 0.0
      %395 = vmatprep.subr.mxu0 0.0
      %396 = vmatpush1.msra.mxu0 0.0
      %397 = vmatprep.subr.mxu0 0.0
      %398 = vmatpush1.msra.mxu0 0.0
      %399 = vmatprep.subr.mxu0 0.0
      %400 = vmatpush1.msra.mxu0 0.0
      %401 = vmatprep.subr.mxu0 0.0
      %402 = vmatpush1.msra.mxu0 0.0
      %403 = vmatprep.subr.mxu0 0.0
      %404 = vmatpush1.msra.mxu0 0.0
      %405 = vmatprep.subr.mxu0 0.0
      %406 = vmatpush1.msra.mxu0 0.0
      %407 = vmatprep.subr.mxu0 0.0
      %408 = vmatpush1.msra.mxu0 0.0
      %409 = vmatprep.subr.mxu0 0.0
      %410 = vmatpush1.msra.mxu0 0.0
      %411 = vmatprep.subr.mxu0 0.0
      %412 = vmatpush1.msra.mxu0 0.0
      %413 = vmatprep.subr.mxu0 0.0
      %414 = vmatpush1.msra.mxu0 0.0
      %415 = vmatprep.subr.mxu0 0.0
      %416 = vmatpush1.msra.mxu0 0.0
      %417 = vmatprep.subr.mxu0 0.0
      %418 = vmatpush1.msra.mxu0 0.0
      %419 = vmatprep.subr.mxu0 0.0
      %420 = vmatpush1.msra.mxu0 0.0
      %421 = vmatprep.subr.mxu0 0.0
      %422 = vmatpush1.msra.mxu0 0.0
      %423 = vmatprep.subr.mxu0 0.0
      %424 = vmatpush1.msra.mxu0 0.0
      %425 = vmatprep.subr.mxu0 0.0
      %426 = vmatpush1.msra.mxu0 0.0
      %427 = vmatprep.subr.mxu0 0.0
      %428 = vmatpush1.msra.mxu0 0.0
      %429 = vmatprep.subr.mxu0 0.0
      %430 = vmatpush1.msra.mxu0 0.0
      %431 = vmatprep.subr.mxu0 0.0
      %432 = vmatpush1.msra.mxu0 0.0
      %433 = vmatprep.subr.mxu0 0.0
      %434 = vmatpush1.msra.mxu0 0.0
      %435 = vmatprep.subr.mxu0 0.0
      %436 = vmatpush1.msra.mxu0 0.0
      %437 = vmatprep.subr.mxu0 0.0
      %438 = vmatpush1.msra.mxu0 0.0
      %439 = vmatprep.subr.mxu0 0.0
      %440 = vmatpush1.msra.mxu0 0.0
      %441 = vmatprep.mubr.f32.mxu0 0.0
      %v442 = vand.u32 %v233, 4294901760
      %443 = vmatmul.mubr.f32.gmra.mrb[0].mxu0 %v442
      %v444 = vpop.f32.mrb[0].mxu0
      %v445 = vadd.f32 %v320, %v444
      %v446 = vpop.f32.mrb[0].mxu0
      %v447 = vadd.f32 %v322, %v446
      %448 = vmatprep.mubr.f32.mxu0 0.0
      %v449 = vand.u32 %v236, 4294901760
      %450 = vmatmul.mubr.f32.gmra.mrb[0].mxu0 %v449
      %v451 = vpop.f32.mrb[0].mxu0
      %v452 = vadd.f32 %v331, %v451
      %v453 = vpop.f32.mrb[0].mxu0
      %v454 = vadd.f32 %v333, %v453
      %455 = vmatprep.mubr.f32.mxu0 0.0
      %v456 = vand.u32 %v239, 4294901760
      %457 = vmatmul.mubr.f32.gmra.mrb[0].mxu0 %v456
      %v458 = vpop.f32.mrb[0].mxu0
      %v459 = vadd.f32 %v342, %v458
      %v460 = vpop.f32.mrb[0].mxu0
      %v461 = vadd.f32 %v344, %v460
      %462 = vmatprep.mubr.f32.mxu0 0.0
      %v463 = vand.u32 %v242, 4294901760
      %464 = vmatmul.mubr.f32.gmra.mrb[0].mxu0 %v463
      %v465 = vpop.f32.mrb[0].mxu0
      %v466 = vadd.f32 %v353, %v465
      %v467 = vpop.f32.mrb[0].mxu0
      %v468 = vadd.f32 %v355, %v467
      %469 = vdwg.mxu0
      %v470 = vand.u32 %v228, 4294901760
      %v471 = vsub.f32 %v228, %v470
      %472 = vmatprep.subr.mxu0 %v471
      %v473 = vand.u32 %v227, 4294901760
      %v474 = vsub.f32 %v227, %v473
      %475 = vmatpush1.msra.mxu0 %v474
      %v476 = vand.u32 %v230, 4294901760
      %v477 = vsub.f32 %v230, %v476
      %478 = vmatprep.subr.mxu0 %v477
      %v479 = vand.u32 %v229, 4294901760
      %v480 = vsub.f32 %v229, %v479
      %481 = vmatpush1.msra.mxu0 %v480
      %482 = vmatprep.subr.mxu0 0.0
      %483 = vmatpush1.msra.mxu0 0.0
      %484 = vmatprep.subr.mxu0 0.0
      %485 = vmatpush1.msra.mxu0 0.0
      %486 = vmatprep.subr.mxu0 0.0
      %487 = vmatpush1.msra.mxu0 0.0
      %488 = vmatprep.subr.mxu0 0.0
      %489 = vmatpush1.msra.mxu0 0.0
      %490 = vmatprep.subr.mxu0 0.0
      %491 = vmatpush1.msra.mxu0 0.0
      %492 = vmatprep.subr.mxu0 0.0
      %493 = vmatpush1.msra.mxu0 0.0
      %494 = vmatprep.subr.mxu0 0.0
      %495 = vmatpush1.msra.mxu0 0.0
      %496 = vmatprep.subr.mxu0 0.0
      %497 = vmatpush1.msra.mxu0 0.0
      %498 = vmatprep.subr.mxu0 0.0
      %499 = vmatpush1.msra.mxu0 0.0
      %500 = vmatprep.subr.mxu0 0.0
      %501 = vmatpush1.msra.mxu0 0.0
      %502 = vmatprep.subr.mxu0 0.0
      %503 = vmatpush1.msra.mxu0 0.0
      %504 = vmatprep.subr.mxu0 0.0
      %505 = vmatpush1.msra.mxu0 0.0
      %506 = vmatprep.subr.mxu0 0.0
      %507 = vmatpush1.msra.mxu0 0.0
      %508 = vmatprep.subr.mxu0 0.0
      %509 = vmatpush1.msra.mxu0 0.0
      %510 = vmatprep.subr.mxu0 0.0
      %511 = vmatpush1.msra.mxu0 0.0
      %512 = vmatprep.subr.mxu0 0.0
      %513 = vmatpush1.msra.mxu0 0.0
      %514 = vmatprep.subr.mxu0 0.0
      %515 = vmatpush1.msra.mxu0 0.0
      %516 = vmatprep.subr.mxu0 0.0
      %517 = vmatpush1.msra.mxu0 0.0
      %518 = vmatprep.subr.mxu0 0.0
      %519 = vmatpush1.msra.mxu0 0.0
      %520 = vmatprep.subr.mxu0 0.0
      %521 = vmatpush1.msra.mxu0 0.0
      %522 = vmatprep.subr.mxu0 0.0
      %523 = vmatpush1.msra.mxu0 0.0
      %524 = vmatprep.subr.mxu0 0.0
      %525 = vmatpush1.msra.mxu0 0.0
      %526 = vmatprep.subr.mxu0 0.0
      %527 = vmatpush1.msra.mxu0 0.0
      %528 = vmatprep.subr.mxu0 0.0
      %529 = vmatpush1.msra.mxu0 0.0
      %530 = vmatprep.subr.mxu0 0.0
      %531 = vmatpush1.msra.mxu0 0.0
      %532 = vmatprep.subr.mxu0 0.0
      %533 = vmatpush1.msra.mxu0 0.0
      %534 = vmatprep.subr.mxu0 0.0
      %535 = vmatpush1.msra.mxu0 0.0
      %536 = vmatprep.subr.mxu0 0.0
      %537 = vmatpush1.msra.mxu0 0.0
      %538 = vmatprep.subr.mxu0 0.0
      %539 = vmatpush1.msra.mxu0 0.0
      %540 = vmatprep.subr.mxu0 0.0
      %541 = vmatpush1.msra.mxu0 0.0
      %542 = vmatprep.mubr.f32.mxu0 0.0
      %v543 = vand.u32 %v233, 4294901760
      %v544 = vsub.f32 %v233, %v543
      %545 = vmatmul.mubr.f32.gmra.mrb[0].mxu0 %v544
      %v546 = vpop.f32.mrb[0].mxu0
      %v547 = vadd.f32 %v445, %v546
      %v548 = vpop.f32.mrb[0].mxu0
      %v549 = vadd.f32 %v447, %v548
      %550 = vmatprep.mubr.f32.mxu0 0.0
      %v551 = vand.u32 %v236, 4294901760
      %v552 = vsub.f32 %v236, %v551
      %553 = vmatmul.mubr.f32.gmra.mrb[0].mxu0 %v552
      %v554 = vpop.f32.mrb[0].mxu0
      %v555 = vadd.f32 %v452, %v554
      %v556 = vpop.f32.mrb[0].mxu0
      %v557 = vadd.f32 %v454, %v556
      %558 = vmatprep.mubr.f32.mxu0 0.0
      %v559 = vand.u32 %v239, 4294901760
      %v560 = vsub.f32 %v239, %v559
      %561 = vmatmul.mubr.f32.gmra.mrb[0].mxu0 %v560
      %v562 = vpop.f32.mrb[0].mxu0
      %v563 = vadd.f32 %v459, %v562
      %v564 = vpop.f32.mrb[0].mxu0
      %v565 = vadd.f32 %v461, %v564
      %566 = vmatprep.mubr.f32.mxu0 0.0
      %v567 = vand.u32 %v242, 4294901760
      %v568 = vsub.f32 %v242, %v567
      %569 = vmatmul.mubr.f32.gmra.mrb[0].mxu0 %v568
      %v570 = vpop.f32.mrb[0].mxu0
      %v571 = vadd.f32 %v466, %v570
      %v572 = vpop.f32.mrb[0].mxu0
      %v573 = vadd.f32 %v468, %v572
      %574 = vdwg.mxu0
      %v575 = vand.u32 %v228, 4294901760
      %576 = vmatprep.subr.mxu0 %v575
      %v577 = vand.u32 %v227, 4294901760
      %578 = vmatpush1.msra.mxu0 %v577
      %v579 = vand.u32 %v230, 4294901760
      %580 = vmatprep.subr.mxu0 %v579
      %v581 = vand.u32 %v229, 4294901760
      %582 = vmatpush1.msra.mxu0 %v581
      %583 = vmatprep.subr.mxu0 0.0
      %584 = vmatpush1.msra.mxu0 0.0
      %585 = vmatprep.subr.mxu0 0.0
      %586 = vmatpush1.msra.mxu0 0.0
      %587 = vmatprep.subr.mxu0 0.0
      %588 = vmatpush1.msra.mxu0 0.0
      %589 = vmatprep.subr.mxu0 0.0
      %590 = vmatpush1.msra.mxu0 0.0
      %591 = vmatprep.subr.mxu0 0.0
      %592 = vmatpush1.msra.mxu0 0.0
      %593 = vmatprep.subr.mxu0 0.0
      %594 = vmatpush1.msra.mxu0 0.0
      %595 = vmatprep.subr.mxu0 0.0
      %596 = vmatpush1.msra.mxu0 0.0
      %597 = vmatprep.subr.mxu0 0.0
      %598 = vmatpush1.msra.mxu0 0.0
      %599 = vmatprep.subr.mxu0 0.0
      %600 = vmatpush1.msra.mxu0 0.0
      %601 = vmatprep.subr.mxu0 0.0
      %602 = vmatpush1.msra.mxu0 0.0
      %603 = vmatprep.subr.mxu0 0.0
      %604 = vmatpush1.msra.mxu0 0.0
      %605 = vmatprep.subr.mxu0 0.0
      %606 = vmatpush1.msra.mxu0 0.0
      %607 = vmatprep.subr.mxu0 0.0
      %608 = vmatpush1.msra.mxu0 0.0
      %609 = vmatprep.subr.mxu0 0.0
      %610 = vmatpush1.msra.mxu0 0.0
      %611 = vmatprep.subr.mxu0 0.0
      %612 = vmatpush1.msra.mxu0 0.0
      %613 = vmatprep.subr.mxu0 0.0
      %614 = vmatpush1.msra.mxu0 0.0
      %615 = vmatprep.subr.mxu0 0.0
      %616 = vmatpush1.msra.mxu0 0.0
      %617 = vmatprep.subr.mxu0 0.0
      %618 = vmatpush1.msra.mxu0 0.0
      %619 = vmatprep.subr.mxu0 0.0
      %620 = vmatpush1.msra.mxu0 0.0
      %621 = vmatprep.subr.mxu0 0.0
      %622 = vmatpush1.msra.mxu0 0.0
      %623 = vmatprep.subr.mxu0 0.0
      %624 = vmatpush1.msra.mxu0 0.0
      %625 = vmatprep.subr.mxu0 0.0
      %626 = vmatpush1.msra.mxu0 0.0
      %627 = vmatprep.subr.mxu0 0.0
      %628 = vmatpush1.msra.mxu0 0.0
      %629 = vmatprep.subr.mxu0 0.0
      %630 = vmatpush1.msra.mxu0 0.0
      %631 = vmatprep.subr.mxu0 0.0
      %632 = vmatpush1.msra.mxu0 0.0
      %633 = vmatprep.subr.mxu0 0.0
      %634 = vmatpush1.msra.mxu0 0.0
      %635 = vmatprep.subr.mxu0 0.0
      %636 = vmatpush1.msra.mxu0 0.0
      %637 = vmatprep.subr.mxu0 0.0
      %638 = vmatpush1.msra.mxu0 0.0
      %639 = vmatprep.subr.mxu0 0.0
      %640 = vmatpush1.msra.mxu0 0.0
      %641 = vmatprep.subr.mxu0 0.0
      %642 = vmatpush1.msra.mxu0 0.0
      %643 = vmatprep.mubr.f32.mxu0 0.0
      %v644 = vand.u32 %v233, 4294901760
      %v645 = vsub.f32 %v233, %v644
      %v646 = vand.u32 %v645, 4294901760
      %647 = vmatmul.mubr.f32.gmra.mrb[0].mxu0 %v646
      %v648 = vpop.f32.mrb[0].mxu0
      %v649 = vadd.f32 %v547, %v648
      %v650 = vpop.f32.mrb[0].mxu0
      %v651 = vadd.f32 %v549, %v650
      %652 = vmatprep.mubr.f32.mxu0 0.0
      %v653 = vand.u32 %v236, 4294901760
      %v654 = vsub.f32 %v236, %v653
      %v655 = vand.u32 %v654, 4294901760
      %656 = vmatmul.mubr.f32.gmra.mrb[0].mxu0 %v655
      %v657 = vpop.f32.mrb[0].mxu0
      %v658 = vadd.f32 %v555, %v657
      %v659 = vpop.f32.mrb[0].mxu0
      %v660 = vadd.f32 %v557, %v659
      %661 = vmatprep.mubr.f32.mxu0 0.0
      %v662 = vand.u32 %v239, 4294901760
      %v663 = vsub.f32 %v239, %v662
      %v664 = vand.u32 %v663, 4294901760
      %665 = vmatmul.mubr.f32.gmra.mrb[0].mxu0 %v664
      %v666 = vpop.f32.mrb[0].mxu0
      %v667 = vadd.f32 %v563, %v666
      %v668 = vpop.f32.mrb[0].mxu0
      %v669 = vadd.f32 %v565, %v668
      %670 = vmatprep.mubr.f32.mxu0 0.0
      %v671 = vand.u32 %v242, 4294901760
      %v672 = vsub.f32 %v242, %v671
      %v673 = vand.u32 %v672, 4294901760
      %674 = vmatmul.mubr.f32.gmra.mrb[0].mxu0 %v673
      %v675 = vpop.f32.mrb[0].mxu0
      %v676 = vadd.f32 %v571, %v675
      %v677 = vpop.f32.mrb[0].mxu0
      %v678 = vadd.f32 %v573, %v677
      %679 = vdwg.mxu0
      %v680 = vand.u32 %v228, 4294901760
      %v681 = vsub.f32 %v228, %v680
      %v682 = vand.u32 %v681, 4294901760
      %683 = vmatprep.subr.mxu0 %v682
      %v684 = vand.u32 %v227, 4294901760
      %v685 = vsub.f32 %v227, %v684
      %v686 = vand.u32 %v685, 4294901760
      %687 = vmatpush1.msra.mxu0 %v686
      %v688 = vand.u32 %v230, 4294901760
      %v689 = vsub.f32 %v230, %v688
      %v690 = vand.u32 %v689, 4294901760
      %691 = vmatprep.subr.mxu0 %v690
      %v692 = vand.u32 %v229, 4294901760
      %v693 = vsub.f32 %v229, %v692
      %v694 = vand.u32 %v693, 4294901760
      %695 = vmatpush1.msra.mxu0 %v694
      %696 = vmatprep.subr.mxu0 0.0
      %697 = vmatpush1.msra.mxu0 0.0
      %698 = vmatprep.subr.mxu0 0.0
      %699 = vmatpush1.msra.mxu0 0.0
      %700 = vmatprep.subr.mxu0 0.0
      %701 = vmatpush1.msra.mxu0 0.0
      %702 = vmatprep.subr.mxu0 0.0
      %703 = vmatpush1.msra.mxu0 0.0
      %704 = vmatprep.subr.mxu0 0.0
      %705 = vmatpush1.msra.mxu0 0.0
      %706 = vmatprep.subr.mxu0 0.0
      %707 = vmatpush1.msra.mxu0 0.0
      %708 = vmatprep.subr.mxu0 0.0
      %709 = vmatpush1.msra.mxu0 0.0
      %710 = vmatprep.subr.mxu0 0.0
      %711 = vmatpush1.msra.mxu0 0.0
      %712 = vmatprep.subr.mxu0 0.0
      %713 = vmatpush1.msra.mxu0 0.0
      %714 = vmatprep.subr.mxu0 0.0
      %715 = vmatpush1.msra.mxu0 0.0
      %716 = vmatprep.subr.mxu0 0.0
      %717 = vmatpush1.msra.mxu0 0.0
      %718 = vmatprep.subr.mxu0 0.0
      %719 = vmatpush1.msra.mxu0 0.0
      %720 = vmatprep.subr.mxu0 0.0
      %721 = vmatpush1.msra.mxu0 0.0
      %722 = vmatprep.subr.mxu0 0.0
      %723 = vmatpush1.msra.mxu0 0.0
      %724 = vmatprep.subr.mxu0 0.0
      %725 = vmatpush1.msra.mxu0 0.0
      %726 = vmatprep.subr.mxu0 0.0
      %727 = vmatpush1.msra.mxu0 0.0
      %728 = vmatprep.subr.mxu0 0.0
      %729 = vmatpush1.msra.mxu0 0.0
      %730 = vmatprep.subr.mxu0 0.0
      %731 = vmatpush1.msra.mxu0 0.0
      %732 = vmatprep.subr.mxu0 0.0
      %733 = vmatpush1.msra.mxu0 0.0
      %734 = vmatprep.subr.mxu0 0.0
      %735 = vmatpush1.msra.mxu0 0.0
      %736 = vmatprep.subr.mxu0 0.0
      %737 = vmatpush1.msra.mxu0 0.0
      %738 = vmatprep.subr.mxu0 0.0
      %739 = vmatpush1.msra.mxu0 0.0
      %740 = vmatprep.subr.mxu0 0.0
      %741 = vmatpush1.msra.mxu0 0.0
      %742 = vmatprep.subr.mxu0 0.0
      %743 = vmatpush1.msra.mxu0 0.0
      %744 = vmatprep.subr.mxu0 0.0
      %745 = vmatpush1.msra.mxu0 0.0
      %746 = vmatprep.subr.mxu0 0.0
      %747 = vmatpush1.msra.mxu0 0.0
      %748 = vmatprep.subr.mxu0 0.0
      %749 = vmatpush1.msra.mxu0 0.0
      %750 = vmatprep.subr.mxu0 0.0
      %751 = vmatpush1.msra.mxu0 0.0
      %752 = vmatprep.subr.mxu0 0.0
      %753 = vmatpush1.msra.mxu0 0.0
      %754 = vmatprep.subr.mxu0 0.0
      %755 = vmatpush1.msra.mxu0 0.0
      %756 = vmatprep.mubr.f32.mxu0 0.0
      %v757 = vand.u32 %v233, 4294901760
      %758 = vmatmul.mubr.f32.gmra.mrb[0].mxu0 %v757
      %v759 = vpop.f32.mrb[0].mxu0
      %v760 = vadd.f32 %v649, %v759
      %v761 = vpop.f32.mrb[0].mxu0
      %v762 = vadd.f32 %v651, %v761
      %763 = vmatprep.mubr.f32.mxu0 0.0
      %v764 = vand.u32 %v236, 4294901760
      %765 = vmatmul.mubr.f32.gmra.mrb[0].mxu0 %v764
      %v766 = vpop.f32.mrb[0].mxu0
      %v767 = vadd.f32 %v658, %v766
      %v768 = vpop.f32.mrb[0].mxu0
      %v769 = vadd.f32 %v660, %v768
      %770 = vmatprep.mubr.f32.mxu0 0.0
      %v771 = vand.u32 %v239, 4294901760
      %772 = vmatmul.mubr.f32.gmra.mrb[0].mxu0 %v771
      %v773 = vpop.f32.mrb[0].mxu0
      %v774 = vadd.f32 %v667, %v773
      %v775 = vpop.f32.mrb[0].mxu0
      %v776 = vadd.f32 %v669, %v775
      %777 = vmatprep.mubr.f32.mxu0 0.0
      %v778 = vand.u32 %v242, 4294901760
      %779 = vmatmul.mubr.f32.gmra.mrb[0].mxu0 %v778
      %v780 = vpop.f32.mrb[0].mxu0
      %v781 = vadd.f32 %v676, %v780
      %v782 = vpop.f32.mrb[0].mxu0
      %v783 = vadd.f32 %v678, %v782
      %784 = vdwg.mxu0
      %v785 = vand.u32 %v228, 4294901760
      %786 = vmatprep.subr.mxu0 %v785
      %v787 = vand.u32 %v227, 4294901760
      %788 = vmatpush1.msra.mxu0 %v787
      %v789 = vand.u32 %v230, 4294901760
      %790 = vmatprep.subr.mxu0 %v789
      %v791 = vand.u32 %v229, 4294901760
      %792 = vmatpush1.msra.mxu0 %v791
      %793 = vmatprep.subr.mxu0 0.0
      %794 = vmatpush1.msra.mxu0 0.0
      %795 = vmatprep.subr.mxu0 0.0
      %796 = vmatpush1.msra.mxu0 0.0
      %797 = vmatprep.subr.mxu0 0.0
      %798 = vmatpush1.msra.mxu0 0.0
      %799 = vmatprep.subr.mxu0 0.0
      %800 = vmatpush1.msra.mxu0 0.0
      %801 = vmatprep.subr.mxu0 0.0
      %802 = vmatpush1.msra.mxu0 0.0
      %803 = vmatprep.subr.mxu0 0.0
      %804 = vmatpush1.msra.mxu0 0.0
      %805 = vmatprep.subr.mxu0 0.0
      %806 = vmatpush1.msra.mxu0 0.0
      %807 = vmatprep.subr.mxu0 0.0
      %808 = vmatpush1.msra.mxu0 0.0
      %809 = vmatprep.subr.mxu0 0.0
      %810 = vmatpush1.msra.mxu0 0.0
      %811 = vmatprep.subr.mxu0 0.0
      %812 = vmatpush1.msra.mxu0 0.0
      %813 = vmatprep.subr.mxu0 0.0
      %814 = vmatpush1.msra.mxu0 0.0
      %815 = vmatprep.subr.mxu0 0.0
      %816 = vmatpush1.msra.mxu0 0.0
      %817 = vmatprep.subr.mxu0 0.0
      %818 = vmatpush1.msra.mxu0 0.0
      %819 = vmatprep.subr.mxu0 0.0
      %820 = vmatpush1.msra.mxu0 0.0
      %821 = vmatprep.subr.mxu0 0.0
      %822 = vmatpush1.msra.mxu0 0.0
      %823 = vmatprep.subr.mxu0 0.0
      %824 = vmatpush1.msra.mxu0 0.0
      %825 = vmatprep.subr.mxu0 0.0
      %826 = vmatpush1.msra.mxu0 0.0
      %827 = vmatprep.subr.mxu0 0.0
      %828 = vmatpush1.msra.mxu0 0.0
      %829 = vmatprep.subr.mxu0 0.0
      %830 = vmatpush1.msra.mxu0 0.0
      %831 = vmatprep.subr.mxu0 0.0
      %832 = vmatpush1.msra.mxu0 0.0
      %833 = vmatprep.subr.mxu0 0.0
      %834 = vmatpush1.msra.mxu0 0.0
      %835 = vmatprep.subr.mxu0 0.0
      %836 = vmatpush1.msra.mxu0 0.0
      %837 = vmatprep.subr.mxu0 0.0
      %838 = vmatpush1.msra.mxu0 0.0
      %839 = vmatprep.subr.mxu0 0.0
      %840 = vmatpush1.msra.mxu0 0.0
      %841 = vmatprep.subr.mxu0 0.0
      %842 = vmatpush1.msra.mxu0 0.0
      %843 = vmatprep.subr.mxu0 0.0
      %844 = vmatpush1.msra.mxu0 0.0
      %845 = vmatprep.subr.mxu0 0.0
      %846 = vmatpush1.msra.mxu0 0.0
      %847 = vmatprep.subr.mxu0 0.0
      %848 = vmatpush1.msra.mxu0 0.0
      %849 = vmatprep.subr.mxu0 0.0
      %850 = vmatpush1.msra.mxu0 0.0
      %851 = vmatprep.subr.mxu0 0.0
      %852 = vmatpush1.msra.mxu0 0.0
      %853 = vmatprep.mubr.f32.mxu0 0.0
      %v854 = vand.u32 %v233, 4294901760
      %855 = vmatmul.mubr.f32.gmra.mrb[0].mxu0 %v854
      %v856 = vpop.f32.mrb[0].mxu0
      %v857 = vadd.f32 %v760, %v856
      %v858 = vpop.f32.mrb[0].mxu0
      %v859 = vadd.f32 %v762, %v858
      %860 = vmatprep.mubr.f32.mxu0 0.0
      %v861 = vand.u32 %v236, 4294901760
      %862 = vmatmul.mubr.f32.gmra.mrb[0].mxu0 %v861
      %v863 = vpop.f32.mrb[0].mxu0
      %v864 = vadd.f32 %v767, %v863
      %v865 = vpop.f32.mrb[0].mxu0
      %v866 = vadd.f32 %v769, %v865
      %867 = vmatprep.mubr.f32.mxu0 0.0
      %v868 = vand.u32 %v239, 4294901760
      %869 = vmatmul.mubr.f32.gmra.mrb[0].mxu0 %v868
      %v870 = vpop.f32.mrb[0].mxu0
      %v871 = vadd.f32 %v774, %v870
      %v872 = vpop.f32.mrb[0].mxu0
      %v873 = vadd.f32 %v776, %v872
      %874 = vmatprep.mubr.f32.mxu0 0.0
      %v875 = vand.u32 %v242, 4294901760
      %876 = vmatmul.mubr.f32.gmra.mrb[0].mxu0 %v875
      %v877 = vpop.f32.mrb[0].mxu0
      %v878 = vadd.f32 %v781, %v877
      %v879 = vpop.f32.mrb[0].mxu0
      %v880 = vadd.f32 %v783, %v879
      %881 = vdwg.mxu0
      %882 = vst [vmem:[%s212] sm:$0xff] %v857
      %883 = vst [vmem:[%s212 + $0x8] sm:$0xff] %v859
      %884 = vst [vmem:[%s212 + $0x10] sm:$0xff] %v864
      %885 = vst [vmem:[%s212 + $0x18] sm:$0xff] %v866
      %886 = vst [vmem:[%s212 + $0x20] sm:$0xff] %v871
      %887 = vst [vmem:[%s212 + $0x28] sm:$0xff] %v873
      %888 = vst [vmem:[%s212 + $0x30] sm:$0xff] %v878
      %889 = vst [vmem:[%s212 + $0x38] sm:$0xff] %v880
      %v890 = vadd.f32 %v857, %v859
      %891 = vadd.xlane.f32.xlu0 %v890
      %v892 = vpop.xlane.xlu0 %891
      %v893 = vadd.f32 %v864, %v866
      %894 = vadd.xlane.f32.xlu0 %v893
      %v895 = vpop.xlane.xlu0 %894
      %v896 = vadd.f32 %v871, %v873
      %897 = vadd.xlane.f32.xlu0 %v896
      %v898 = vpop.xlane.xlu0 %897
      %v899 = vadd.f32 %v878, %v880
      %900 = vadd.xlane.f32.xlu0 %v899
      %v901 = vpop.xlane.xlu0 %900
      %vm902 = vcmask 7168
      %903 = vst.msk [vmem:[%s217] sm:$0xff] %vm902, %v892
      %904 = vst.msk [vmem:[%s217 + $0x8] sm:$0xff] %vm902, %v895
      %905 = vst.msk [vmem:[%s217 + $0x10] sm:$0xff] %vm902, %v898
      %906 = vst.msk [vmem:[%s217 + $0x18] sm:$0xff] %vm902, %v901
      %v907 = vmul.f32 %v857, %v857
      %v908 = vmul.f32 %v859, %v859
      %v909 = vmul.f32 %v864, %v864
      %v910 = vmul.f32 %v866, %v866
      %v911 = vmul.f32 %v871, %v871
      %v912 = vmul.f32 %v873, %v873
      %v913 = vmul.f32 %v878, %v878
      %v914 = vmul.f32 %v880, %v880
      %v915 = vadd.f32 %v907, %v908
      %916 = vadd.xlane.f32.xlu0 %v915
      %v917 = vpop.xlane.xlu0 %916
      %v918 = vadd.f32 %v909, %v910
      %919 = vadd.xlane.f32.xlu0 %v918
      %v920 = vpop.xlane.xlu0 %919
      %v921 = vadd.f32 %v911, %v912
      %922 = vadd.xlane.f32.xlu0 %v921
      %v923 = vpop.xlane.xlu0 %922
      %v924 = vadd.f32 %v913, %v914
      %925 = vadd.xlane.f32.xlu0 %v924
      %v926 = vpop.xlane.xlu0 %925
      %927 = vst.msk [vmem:[%s222] sm:$0xff] %vm902, %v917
      %928 = vst.msk [vmem:[%s222 + $0x8] sm:$0xff] %vm902, %v920
      %929 = vst.msk [vmem:[%s222 + $0x10] sm:$0xff] %vm902, %v923
      %930 = vst.msk [vmem:[%s222 + $0x18] sm:$0xff] %vm902, %v926
      %p931 = scmp.lt.s32.totalorder %s16, 1
      %s932 = scalar_select %p931, %s16, 1
      %s933 = smul.addr %s932, 8
      %s934 = smul.addr %s933, 8
      %s935 = scalar_lea.vmem %s2, %s934
      %p936 = scmp.lt.s32.totalorder %s16, 1
      %s937 = scalar_select %p936, %s16, 1
      %s938 = smul.addr %s937, 4
      %s939 = smul.addr %s938, 8
      %s940 = scalar_lea.vmem %s3, %s939
      %p941 = scmp.lt.s32.totalorder %s16, 1
      %s942 = scalar_select %p941, %s16, 1
      %s943 = smul.addr %s942, 4
      %s944 = smul.addr %s943, 8
      %s945 = scalar_lea.vmem %s4, %s944
      // Predicated region
      $region29: #{trans_conv_forward.2} parent=27 // pred_check
        %p946 = pneg %p81
      $region30: #{trans_conv_forward.2} parent=27 // pred_check_branch
        %948 = sbr.rel (%p946) target = $region32
      $region31: #{trans_conv_forward.2} parent=27 // pred_region
        _
      $region32: #{trans_conv_forward.2} parent=27 // pred_fallthru
        _
      // Predicated region
      $region33: #{trans_conv_forward.2} parent=27 // pred_check
        %p949 = pneg %p107
      $region34: #{trans_conv_forward.2} parent=27 // pred_check_branch
        %951 = sbr.rel (%p949) target = $region36
      $region35: #{trans_conv_forward.2} parent=27 // pred_region
        _
      $region36: #{trans_conv_forward.2} parent=27 // pred_fallthru
        _
      // Predicated region
      $region37: #{trans_conv_forward.2} parent=27 // pred_check
        %p952 = pneg %p133
      $region38: #{trans_conv_forward.2} parent=27 // pred_check_branch
        %954 = sbr.rel (%p952) target = $region40
      $region39: #{trans_conv_forward.2} parent=27 // pred_region
        _
      $region40: #{trans_conv_forward.2} parent=27 // pred_fallthru
        _
    $region28: #{trans_conv_forward.2} parent=5 // pred_fallthru
      _
    %p955 = scmp.le.s32.totalorder 2, %s11
    // Predicated region
    $region41: #{trans_conv_forward.2} parent=5 // pred_check
      %p956 = pneg %p955
    $region42: #{trans_conv_forward.2} parent=5 // pred_check_branch
      %958 = sbr.rel (%p956) target = $region44
    $region43: #{trans_conv_forward.2} parent=5 // pred_region
      %s959 = ssub.s32 %s11, 2
      // Predicated region
      $region45: #{trans_conv_forward.2} parent=43 // pred_check
        %p960 = pneg %p87
      $region46: #{trans_conv_forward.2} parent=43 // pred_check_branch
        %962 = sbr.rel (%p960) target = $region48
      $region47: #{trans_conv_forward.2} parent=43 // pred_region
        %p963 = scmp.lt.s32.totalorder %s17, 1
        %s964 = scalar_select %p963, %s17, 1
        %s965 = smul.addr %s964, 8
        %s966 = smul.addr %s965, 8
        %s967 = scalar_lea.vmem %s2, %s966
      $region48: #{trans_conv_forward.2} parent=43 // pred_fallthru
        _
      // Predicated region
      $region49: #{trans_conv_forward.2} parent=43 // pred_check
        %p968 = pneg %p113
      $region50: #{trans_conv_forward.2} parent=43 // pred_check_branch
        %970 = sbr.rel (%p968) target = $region52
      $region51: #{trans_conv_forward.2} parent=43 // pred_region
        %p971 = scmp.lt.s32.totalorder %s17, 1
        %s972 = scalar_select %p971, %s17, 1
        %s973 = smul.addr %s972, 4
        %s974 = smul.addr %s973, 8
        %s975 = scalar_lea.vmem %s3, %s974
      $region52: #{trans_conv_forward.2} parent=43 // pred_fallthru
        _
      // Predicated region
      $region53: #{trans_conv_forward.2} parent=43 // pred_check
        %p976 = pneg %p139
      $region54: #{trans_conv_forward.2} parent=43 // pred_check_branch
        %978 = sbr.rel (%p976) target = $region56
      $region55: #{trans_conv_forward.2} parent=43 // pred_region
        %p979 = scmp.lt.s32.totalorder %s17, 1
        %s980 = scalar_select %p979, %s17, 1
        %s981 = smul.addr %s980, 4
        %s982 = smul.addr %s981, 8
        %s983 = scalar_lea.vmem %s4, %s982
      $region56: #{trans_conv_forward.2} parent=43 // pred_fallthru
        _
    $region44: #{trans_conv_forward.2} parent=5 // pred_fallthru
      _
  $region6: #{trans_conv_forward.2} parent=0 // loop_footer
    %s15 = sadd.s32 1, %s11
  $region7: #{trans_conv_forward.2} parent=0 // loop_footer_branch
    %10 = sbr.rel target = $region3
  $region8: #{trans_conv_forward.2} parent=0 // loop_exit
    _

</llo_original>
